<compile_context>
chip_gen: v5e
topology: v5e:2x2
jax: 0.10.0
libtpu: 0.0.40
codegen_flags: <defaults>
</compile_context>

<pallas_src>
import functools

import jax
import jax.numpy as jnp
from jax.experimental import pallas as pl
from jax.experimental.pallas import tpu as pltpu  # noqa: F401  (TPU backend)


# --------------------------------------------------------------------------- #
# Fused Pallas kernel: embedding gather + GRUCell (h_prev == 0) + Linear head
# --------------------------------------------------------------------------- #
def gru_fc_kernel(tok_ref, emb_ref, wg_ref, bih_ref, bhh_ref, fcw_ref,
                  fcb_ref, out_ref, *, hidden_size):
    """tok:(B,1)i32  emb:(C,D)  wg:(D,3H)  bih/bhh:(1,3H)  fcw:(H,O)  fcb:(1,O)."""
    H = hidden_size
    B = tok_ref.shape[0]
    C = emb_ref.shape[0]

    # --- embedding gather via one-hot MXU matmul (exact for f32 rows) ------ #
    cols = jax.lax.broadcasted_iota(jnp.int32, (B, C), 1)
    one_hot = (cols == tok_ref[...]).astype(jnp.float32)            # (B, C)
    x = jnp.dot(one_hot, emb_ref[...],
                preferred_element_type=jnp.float32)                 # (B, D)

    # --- GRUCell with h_prev == 0: one MXU push for all three gates -------- #
    g = jnp.dot(x, wg_ref[...], preferred_element_type=jnp.float32)  # (B, 3H)
    bih = bih_ref[...]
    bhh = bhh_ref[...]
    r = jax.nn.sigmoid(g[:, 0 * H:1 * H] + bih[:, 0 * H:1 * H] + bhh[:, 0 * H:1 * H])
    z = jax.nn.sigmoid(g[:, 1 * H:2 * H] + bih[:, 1 * H:2 * H] + bhh[:, 1 * H:2 * H])
    n = jnp.tanh(g[:, 2 * H:3 * H] + bih[:, 2 * H:3 * H] + r * bhh[:, 2 * H:3 * H])
    h = (1.0 - z) * n                        # h' = (1-z)*n + z*h_prev, h_prev=0

    # --- fused fc head: (B, H) @ (H, O) + (1, O) ---------------------------- #
    out_ref[...] = (jnp.dot(h, fcw_ref[...], preferred_element_type=jnp.float32)
                    + fcb_ref[...]).astype(out_ref.dtype)


def gru_fc_pallas(tok_last, embedding, w_gates, b_ih, b_hh, fc_w_t, fc_b):
    B = tok_last.shape[0]
    H, O = fc_w_t.shape
    # Everything fits in one VMEM block -> no grid, no BlockSpec plumbing.
    # TODO(synk): if B is scaled up, add a row grid (grid=(pl.cdiv(B, TM),),
    # TM a multiple of 8, dimension_semantics=("parallel",)) to use both v7x
    # TensorCores and keep the block under the scoped-VMEM limit; for large
    # D/H also cast activations/weights to bf16 (MXU-native, f32 accumulate).
    return pl.pallas_call(
        functools.partial(gru_fc_kernel, hidden_size=H),
        out_shape=jax.ShapeDtypeStruct((B, O), jnp.float32),
    )(tok_last, embedding, w_gates, b_ih, b_hh, fc_w_t, fc_b)


# --------------------------------------------------------------------------- #
# Parameters (deterministic, synthetic) and forward wrapper
# --------------------------------------------------------------------------- #
def init_params(key, c_number, input_size, hidden_size, output_size):
    ks = jax.random.split(key, 6)
    k = 1.0 / jnp.sqrt(hidden_size)
    return {
        "embedding": jax.random.normal(ks[0], (c_number, input_size),
                                       jnp.float32),
        # nn.GRUCell parameters (gate order r, z, n).  weight_hh exists in the
        # torch module but multiplies h_prev == 0, so only bias_hh survives.
        "w_ih": jax.random.uniform(ks[1], (3 * hidden_size, input_size),
                                   jnp.float32, -k, k),
        "b_ih": jax.random.uniform(ks[2], (3 * hidden_size,),
                                   jnp.float32, -k, k),
        "b_hh": jax.random.uniform(ks[3], (3 * hidden_size,),
                                   jnp.float32, -k, k),
        "fc_w": jax.random.uniform(ks[4], (output_size, hidden_size),
                                   jnp.float32, -k, k),
        "fc_b": jax.random.uniform(ks[5], (output_size,),
                                   jnp.float32, -k, k),
    }


def grucell_net_forward(tokens, params):
    # Only the last timestep's hidden state is ever consumed by fn_1 / fc,
    # so only tokens[:, -1] reaches the kernel (embedding gather is in-kernel).
    tok_last = tokens[:, -1:].astype(jnp.int32)                      # (B, 1)
    # Fused gate weights: (D, 3H) columns = [W_ir^T | W_iz^T | W_in^T].
    out = gru_fc_pallas(tok_last,
                        params["embedding"],
                        params["w_ih"].T,
                        params["b_ih"][None],
                        params["b_hh"][None],
                        params["fc_w"].T,
                        params["fc_b"][None])                        # (B, O)
    return out[None]                                                 # (1, B, O)


# --------------------------------------------------------------------------- #
# Pure-JAX reference that literally mirrors the PyTorch fn_1 / forward
# --------------------------------------------------------------------------- #
def reference_forward(tokens, params):
    emb = params["embedding"][tokens]                                # (B, S, D)
    w_ih, b_ih, b_hh = params["w_ih"], params["b_ih"], params["b_hh"]
    H = b_hh.shape[0] // 3

    def grucell(x_t):                                                # h_prev=0
        g = x_t @ w_ih.T
        r = jax.nn.sigmoid(g[:, :H] + b_ih[:H] + b_hh[:H])
        z = jax.nn.sigmoid(g[:, H:2 * H] + b_ih[H:2 * H] + b_hh[H:2 * H])
        n = jnp.tanh(g[:, 2 * H:] + b_ih[2 * H:] + r * b_hh[2 * H:])
        return (1.0 - z) * n

    x = jnp.transpose(emb, (1, 0, 2))                                # (S, B, D)
    S = x.shape[0]
    hiddens = [grucell(x[t]) for t in range(S)]
    x_last = hiddens[-1][None]
    hiddens_back = [grucell(x[t]) for t in range(S)]                 # same x[t]!
    x_last_back = hiddens_back[-1][None]
    x_finall = jnp.mean(jnp.concatenate([x_last, x_last_back], axis=0),
                        axis=0)[None]                                # (1, B, H)
    return x_finall @ params["fc_w"].T + params["fc_b"]              # (1, B, O)


# --------------------------------------------------------------------------- #
if __name__ == "__main__":
    c_number, input_size, hidden_size, output_size = 20, 16, 32, 10
    B, S = 2, 8

    key = jax.random.PRNGKey(0)
    pkey, dkey = jax.random.split(key)
    params = init_params(pkey, c_number, input_size, hidden_size, output_size)
    tokens = jax.random.randint(dkey, (B, S), 0, c_number, dtype=jnp.int32)

    out = grucell_net_forward(tokens, params)
    out = jax.block_until_ready(out)
    assert out.shape == (1, B, output_size), out.shape

    ref = reference_forward(tokens, params)
    assert jnp.allclose(out, ref, atol=1e-5), float(jnp.max(jnp.abs(out - ref)))

    print("KERNEL_OK")
</pallas_src>

<mosaic_0001>
module attributes {stable_mosaic.version = 11 : i64} {
  func.func @gru_fc_kernel(%arg0: memref<2x1xi32, #tpu.memory_space<vmem>>, %arg1: memref<20x16xf32, #tpu.memory_space<vmem>>, %arg2: memref<16x96xf32, #tpu.memory_space<vmem>>, %arg3: memref<1x96xf32, #tpu.memory_space<vmem>>, %arg4: memref<1x96xf32, #tpu.memory_space<vmem>>, %arg5: memref<32x10xf32, #tpu.memory_space<vmem>>, %arg6: memref<1x10xf32, #tpu.memory_space<vmem>>, %arg7: memref<2x10xf32, #tpu.memory_space<vmem>>) attributes {dimension_semantics = [], scalar_prefetch = 0 : i64, scratch_operands = 0 : i64, tpu.core_type = #tpu.core_type<tc>} {
    %0 = tpu.iota {dimensions = array<i32: 1>} : vector<2x20xi32>
    %c0 = arith.constant 0 : index
    %c0_0 = arith.constant 0 : index
    %1 = vector.load %arg0[%c0, %c0_0] : memref<2x1xi32, #tpu.memory_space<vmem>>, vector<2x1xi32>
    %2 = vector.broadcast %1 : vector<2x1xi32> to vector<2x20xi32>
    %3 = arith.cmpi eq, %0, %2 : vector<2x20xi32>
    %4 = arith.extui %3 : vector<2x20xi1> to vector<2x20xi32>
    %5 = arith.sitofp %4 : vector<2x20xi32> to vector<2x20xf32>
    %c0_1 = arith.constant 0 : index
    %c0_2 = arith.constant 0 : index
    %6 = vector.load %arg1[%c0_1, %c0_2] : memref<20x16xf32, #tpu.memory_space<vmem>>, vector<20x16xf32>
    %cst = arith.constant dense<0.000000e+00> : vector<2x16xf32>
    %7 = tpu.matmul %5, %6, %cst {dimension_numbers = #tpu.dot_dimension_numbers<[1], [0], [0], [1], [0, 0, 1, 1], [], []>} : vector<2x20xf32>, vector<20x16xf32>, vector<2x16xf32> -> vector<2x16xf32>
    %c0_3 = arith.constant 0 : index
    %c0_4 = arith.constant 0 : index
    %8 = vector.load %arg2[%c0_3, %c0_4] : memref<16x96xf32, #tpu.memory_space<vmem>>, vector<16x96xf32>
    %cst_5 = arith.constant dense<0.000000e+00> : vector<2x96xf32>
    %9 = tpu.matmul %7, %8, %cst_5 {dimension_numbers = #tpu.dot_dimension_numbers<[1], [0], [0], [1], [0, 0, 1, 1], [], []>} : vector<2x16xf32>, vector<16x96xf32>, vector<2x96xf32> -> vector<2x96xf32>
    %c0_6 = arith.constant 0 : index
    %c0_7 = arith.constant 0 : index
    %10 = vector.load %arg3[%c0_6, %c0_7] : memref<1x96xf32, #tpu.memory_space<vmem>>, vector<1x96xf32>
    %c0_8 = arith.constant 0 : index
    %c0_9 = arith.constant 0 : index
    %11 = vector.load %arg4[%c0_8, %c0_9] : memref<1x96xf32, #tpu.memory_space<vmem>>, vector<1x96xf32>
    %12 = vector.extract_strided_slice %9 {offsets = [0, 0], sizes = [2, 32], strides = [1, 1]} : vector<2x96xf32> to vector<2x32xf32>
    %13 = vector.extract_strided_slice %10 {offsets = [0, 0], sizes = [1, 32], strides = [1, 1]} : vector<1x96xf32> to vector<1x32xf32>
    %14 = vector.broadcast %13 : vector<1x32xf32> to vector<2x32xf32>
    %15 = arith.addf %12, %14 : vector<2x32xf32>
    %16 = vector.extract_strided_slice %11 {offsets = [0, 0], sizes = [1, 32], strides = [1, 1]} : vector<1x96xf32> to vector<1x32xf32>
    %17 = vector.broadcast %16 : vector<1x32xf32> to vector<2x32xf32>
    %18 = arith.addf %15, %17 : vector<2x32xf32>
    %19 = arith.negf %18 : vector<2x32xf32>
    %20 = math.exp %19 : vector<2x32xf32>
    %cst_10 = arith.constant 1.000000e+00 : f32
    %21 = vector.broadcast %cst_10 : f32 to vector<2x32xf32>
    %22 = arith.addf %21, %20 : vector<2x32xf32>
    %23 = arith.divf %21, %22 : vector<2x32xf32>
    %24 = vector.extract_strided_slice %9 {offsets = [0, 32], sizes = [2, 32], strides = [1, 1]} : vector<2x96xf32> to vector<2x32xf32>
    %25 = vector.extract_strided_slice %10 {offsets = [0, 32], sizes = [1, 32], strides = [1, 1]} : vector<1x96xf32> to vector<1x32xf32>
    %26 = vector.broadcast %25 : vector<1x32xf32> to vector<2x32xf32>
    %27 = arith.addf %24, %26 : vector<2x32xf32>
    %28 = vector.extract_strided_slice %11 {offsets = [0, 32], sizes = [1, 32], strides = [1, 1]} : vector<1x96xf32> to vector<1x32xf32>
    %29 = vector.broadcast %28 : vector<1x32xf32> to vector<2x32xf32>
    %30 = arith.addf %27, %29 : vector<2x32xf32>
    %31 = arith.negf %30 : vector<2x32xf32>
    %32 = math.exp %31 : vector<2x32xf32>
    %cst_11 = arith.constant 1.000000e+00 : f32
    %33 = vector.broadcast %cst_11 : f32 to vector<2x32xf32>
    %34 = arith.addf %33, %32 : vector<2x32xf32>
    %35 = arith.divf %33, %34 : vector<2x32xf32>
    %36 = vector.extract_strided_slice %9 {offsets = [0, 64], sizes = [2, 32], strides = [1, 1]} : vector<2x96xf32> to vector<2x32xf32>
    %37 = vector.extract_strided_slice %10 {offsets = [0, 64], sizes = [1, 32], strides = [1, 1]} : vector<1x96xf32> to vector<1x32xf32>
    %38 = vector.broadcast %37 : vector<1x32xf32> to vector<2x32xf32>
    %39 = arith.addf %36, %38 : vector<2x32xf32>
    %40 = vector.extract_strided_slice %11 {offsets = [0, 64], sizes = [1, 32], strides = [1, 1]} : vector<1x96xf32> to vector<1x32xf32>
    %41 = vector.broadcast %40 : vector<1x32xf32> to vector<2x32xf32>
    %42 = arith.mulf %23, %41 : vector<2x32xf32>
    %43 = arith.addf %39, %42 : vector<2x32xf32>
    %44 = math.tanh %43 : vector<2x32xf32>
    %cst_12 = arith.constant 1.000000e+00 : f32
    %45 = vector.broadcast %cst_12 : f32 to vector<2x32xf32>
    %46 = arith.subf %45, %35 : vector<2x32xf32>
    %47 = arith.mulf %46, %44 : vector<2x32xf32>
    %c0_13 = arith.constant 0 : index
    %c0_14 = arith.constant 0 : index
    %48 = vector.load %arg5[%c0_13, %c0_14] : memref<32x10xf32, #tpu.memory_space<vmem>>, vector<32x10xf32>
    %cst_15 = arith.constant dense<0.000000e+00> : vector<2x10xf32>
    %49 = tpu.matmul %47, %48, %cst_15 {dimension_numbers = #tpu.dot_dimension_numbers<[1], [0], [0], [1], [0, 0, 1, 1], [], []>} : vector<2x32xf32>, vector<32x10xf32>, vector<2x10xf32> -> vector<2x10xf32>
    %c0_16 = arith.constant 0 : index
    %c0_17 = arith.constant 0 : index
    %50 = vector.load %arg6[%c0_16, %c0_17] : memref<1x10xf32, #tpu.memory_space<vmem>>, vector<1x10xf32>
    %51 = vector.broadcast %50 : vector<1x10xf32> to vector<2x10xf32>
    %52 = arith.addf %49, %51 : vector<2x10xf32>
    %c0_18 = arith.constant 0 : index
    %c0_19 = arith.constant 0 : index
    %53 = vector.load %arg7[%c0_18, %c0_19] : memref<2x10xf32, #tpu.memory_space<vmem>>, vector<2x10xf32>
    tpu.vector_store %arg7[%c0_18, %c0_19], %52 {strides = array<i32>} : memref<2x10xf32, #tpu.memory_space<vmem>>, vector<2x10xf32>,
    return
  }
}

</mosaic_0001>

<llo_original>
// kernel: tpu_custom_call.1
$region0: #{tpu_custom_call.1}
  #allocation0 [shape = 'u32[]', space=smem, size = 0x4, offset = 0x4, fixed_abs, tag = 'smem constant byte address 0x4 - core index']
  #allocation1 [shape = 'u32[72,128]{1,0:T(1,128)}', space=vmem, size = 0x9000, scoped, tag = 'internal scratch']
  %s0 = inlined_call_operand.vmem [shape: s32[2,1], index: 0, kind: input, shape index: {}]
  %s1 = inlined_call_operand.vmem [shape: f32[20,16], index: 1, kind: input, shape index: {}]
  %s2 = inlined_call_operand.vmem [shape: f32[16,96], index: 2, kind: input, shape index: {}]
  %s3 = inlined_call_operand.vmem [shape: f32[1,96], index: 3, kind: input, shape index: {}]
  %s4 = inlined_call_operand.vmem [shape: f32[1,96], index: 4, kind: input, shape index: {}]
  %s5 = inlined_call_operand.vmem [shape: f32[32,10], index: 5, kind: input, shape index: {}]
  %s6 = inlined_call_operand.vmem [shape: f32[1,10], index: 6, kind: input, shape index: {}]
  %s7 = inlined_call_operand.hbm [shape: f32[2,10], index: 7, kind: output, shape index: {}]
  %s8 = sld [smem:[#allocation0]]
  $region38: #{tpu_custom_call.1} parent=0
    _
  %s10 = ssub.s32 1, %s8
  %s11 = scalar_select 0, %s10, %s8
  $region1: #{tpu_custom_call.1} parent=0
    #allocation2 [shape = 'u8[1024]{0}', space=vmem, size = 0x400, scoped, tag = 'output window, operand 0, single buffered']
    #allocation3 [shape = 's32[1]{0}', space=sflag, size = 0x4, scoped, tag = 'scoped memory for tpu_custom_call.1']
    %12 = vsyncpa [#allocation3], 0
    // Predicated region
    $region2: #{tpu_custom_call.1} parent=1 // pred_check
      _
    $region3: #{tpu_custom_call.1} parent=1 // pred_check_branch
      %14 = sbr.rel (0) target = $region5
    $region4: #{tpu_custom_call.1} parent=1 // pred_region
      _
    $region5: #{tpu_custom_call.1} parent=1 // pred_fallthru
      _
    // Predicated region
    $region6: #{tpu_custom_call.1} parent=1 // pred_check
      _
    $region7: #{tpu_custom_call.1} parent=1 // pred_check_branch
      %16 = sbr.rel (0) target = $region9
    $region8: #{tpu_custom_call.1} parent=1 // pred_region
      _
    $region9: #{tpu_custom_call.1} parent=1 // pred_fallthru
      _
    // Predicated region
    $region10: #{tpu_custom_call.1} parent=1 // pred_check
      _
    $region11: #{tpu_custom_call.1} parent=1 // pred_check_branch
      %18 = sbr.rel (0) target = $region13
    $region12: #{tpu_custom_call.1} parent=1 // pred_region
      _
    $region13: #{tpu_custom_call.1} parent=1 // pred_fallthru
      _
    // Predicated region
    $region14: #{tpu_custom_call.1} parent=1 // pred_check
      _
    $region15: #{tpu_custom_call.1} parent=1 // pred_check_branch
      %20 = sbr.rel (0) target = $region17
    $region16: #{tpu_custom_call.1} parent=1 // pred_region
      _
    $region17: #{tpu_custom_call.1} parent=1 // pred_fallthru
      _
    // Predicated region
    $region18: #{tpu_custom_call.1} parent=1 // pred_check
      _
    $region19: #{tpu_custom_call.1} parent=1 // pred_check_branch
      %22 = sbr.rel (0) target = $region21
    $region20: #{tpu_custom_call.1} parent=1 // pred_region
      _
    $region21: #{tpu_custom_call.1} parent=1 // pred_fallthru
      _
    // Predicated region
    $region22: #{tpu_custom_call.1} parent=1 // pred_check
      _
    $region23: #{tpu_custom_call.1} parent=1 // pred_check_branch
      %24 = sbr.rel (0) target = $region25
    $region24: #{tpu_custom_call.1} parent=1 // pred_region
      _
    $region25: #{tpu_custom_call.1} parent=1 // pred_fallthru
      _
    // Predicated region
    $region26: #{tpu_custom_call.1} parent=1 // pred_check
      _
    $region27: #{tpu_custom_call.1} parent=1 // pred_check_branch
      %26 = sbr.rel (0) target = $region29
    $region28: #{tpu_custom_call.1} parent=1 // pred_region
      _
    $region29: #{tpu_custom_call.1} parent=1 // pred_fallthru
      _
    %v27 = vlaneseq
    %v28 = vand.u32 %v27, 127
    %v29 = vld [vmem:[%s0] sm:$0x3]
    %30 = vset.pattern.permute.xlu0 0
    %31 = vperm.xlu0 %30, %v29
    %v32 = vpop.permute.xlu0 %31
    %vm33 = vcmp.eq.s32.totalorder %v28, %v32
    %v34 = vsel %vm33, 1, 0
    %v35 = vcvt.s32.f32 %v34
    %v36 = vld [vmem:[%s1] sm:$0xff]
    %v37 = vld [vmem:[%s1 + $0x8] sm:$0xff]
    %v38 = vld [vmem:[%s1 + $0x10] sm:$0xf]
    %vm39 = vcmask 162816
    %v41 = vsel %vm39, %v35, 0
    %vm43 = vcmask 1043456
    %v45 = vsel %vm43, %v38, 0
    %47 = vmatpush.msra.mxu0 0.0
    %48 = vmatpush.msra.mxu0 0.0
    %49 = vmatpush.msra.mxu0 0.0
    %50 = vmatpush.msra.mxu0 0.0
    %51 = vmatpush.msra.mxu0 0.0
    %52 = vmatpush.msra.mxu0 0.0
    %53 = vmatpush.msra.mxu0 0.0
    %54 = vmatpush.msra.mxu0 0.0
    %55 = vmatpush.msra.mxu0 0.0
    %56 = vmatpush.msra.mxu0 0.0
    %57 = vmatpush.msra.mxu0 0.0
    %58 = vmatpush.msra.mxu0 0.0
    %59 = vmatpush.msra.mxu0 0.0
    %60 = vmatpush.msra.mxu0 %v45
    %61 = vmatpush.msra.mxu0 %v37
    %62 = vmatpush.msra.mxu0 %v36
    %63 = vmatmul.f32.gmra.mxu0 %v41
    %v64 = vpop.f32.mrf.mxu0
    %v65 = vadd.f32 0.0, %v64
    %66 = vdwg.mxu0
    %v67 = vld [vmem:[%s2] sm:$0xff]
    %v68 = vld [vmem:[%s2 + $0x8] sm:$0xff]
    %vm69 = vcmask 130048
    %v71 = vsel %vm69, %v65, 0
    %73 = vmatpush.msra.mxu0 0.0
    %74 = vmatpush.msra.mxu0 0.0
    %75 = vmatpush.msra.mxu0 0.0
    %76 = vmatpush.msra.mxu0 0.0
    %77 = vmatpush.msra.mxu0 0.0
    %78 = vmatpush.msra.mxu0 0.0
    %79 = vmatpush.msra.mxu0 0.0
    %80 = vmatpush.msra.mxu0 0.0
    %81 = vmatpush.msra.mxu0 0.0
    %82 = vmatpush.msra.mxu0 0.0
    %83 = vmatpush.msra.mxu0 0.0
    %84 = vmatpush.msra.mxu0 0.0
    %85 = vmatpush.msra.mxu0 0.0
    %86 = vmatpush.msra.mxu0 0.0
    %87 = vmatpush.msra.mxu0 %v68
    %88 = vmatpush.msra.mxu0 %v67
    %89 = vmatmul.f32.gmra.mxu0 %v71
    %v90 = vpop.f32.mrf.mxu0
    %v91 = vadd.f32 0.0, %v90
    %92 = vdwg.mxu0
    %v93 = vld [vmem:[%s3] sm:$0x1]
    %v94 = vld [vmem:[%s4] sm:$0x1]
    %v96 = vperm.slane %v93, 0
    %v98 = vadd.f32 %v91, %v96
    %v100 = vperm.slane %v94, 0
    %v102 = vadd.f32 %v98, %v100
    %v103 = vxor.u32 %v102, 2147483648
    %v104 = vmul.f32 %v103, 1.442695
    %v105 = vpow.pop %v104
    %v106 = vadd.f32 %v105, 1.0
    %v107 = vrcp.pop %v106
    %v108 = vmul.f32 %v106, %v107
    %v109 = vsub.f32 1.0, %v108
    %v110 = vmul.f32 %v107, %v109
    %v111 = vadd.f32 %v107, %v110
    %vm112 = vweird.f32 %v106
    %vm113 = vweird.f32 %v107
    %vm114 = vmor %vm112, %vm113
    %v115 = vsel %vm114, %v107, %v111
    %v116 = vand.u32 2147483647, %v106
    %vm117 = vcmp.eq.f32.partialorder %v116, 8.507059e+37
    %v118 = vand.u32 %v106, 2147483648
    %v119 = vor.u32 1.1754944e-38, %v118
    %v120 = vsel %vm117, %v119, %v115
    %v121 = vmul.f32 1.0, %v120
    %122 = vrot.lane.b32.xlu0 %v100, 64
    %v123 = vpop.permute.xlu0 %122
    %v125 = vmul.f32 %v121, %v123
    %127 = vrot.lane.b32.xlu0 %v125, 64
    %v128 = vpop.permute.xlu0 %127
    %v130 = vadd.f32 %v98, %v128
    %v131 = vtanh.pop %v130
    %v132 = vsub.f32 1.0, %v121
    %134 = vrot.lane.b32.xlu0 %v131, 96
    %v135 = vpop.permute.xlu0 %134
    %v137 = vmul.f32 %v132, %v135
    %v138 = vld [vmem:[%s5] sm:$0xff]
    %v139 = vld [vmem:[%s5 + $0x8] sm:$0xff]
    %v140 = vld [vmem:[%s5 + $0x10] sm:$0xff]
    %v141 = vld [vmem:[%s5 + $0x18] sm:$0xff]
    %v142 = vld [vmem:[%s6] sm:$0x1]
    %v144 = vperm.slane %v142, 0
    %147 = vrot.lane.b32.xlu0 %v137, 96
    %v148 = vpop.permute.xlu0 %147
    %vm149 = vcmask 261120
    %v150 = vsel %vm149, %v148, 0
    %152 = vmatpush.msra.mxu0 0.0
    %153 = vmatpush.msra.mxu0 0.0
    %154 = vmatpush.msra.mxu0 0.0
    %155 = vmatpush.msra.mxu0 0.0
    %156 = vmatpush.msra.mxu0 0.0
    %157 = vmatpush.msra.mxu0 0.0
    %158 = vmatpush.msra.mxu0 0.0
    %159 = vmatpush.msra.mxu0 0.0
    %160 = vmatpush.msra.mxu0 0.0
    %161 = vmatpush.msra.mxu0 0.0
    %162 = vmatpush.msra.mxu0 0.0
    %163 = vmatpush.msra.mxu0 0.0
    %164 = vmatpush.msra.mxu0 %v141
    %165 = vmatpush.msra.mxu0 %v140
    %166 = vmatpush.msra.mxu0 %v139
    %167 = vmatpush.msra.mxu0 %v138
    %168 = vmatmul.f32.gmra.mxu0 %v150
    %v169 = vpop.f32.mrf.mxu0
    %v170 = vadd.f32 %v144, %v169
    %171 = vdwg.mxu0
    %vm172 = vcmask 74752
    %173 = vst.msk [vmem:[#allocation2] sm:$0x3] %vm172, %v170
    // Predicated region
    $region30: #{tpu_custom_call.1} parent=1 // pred_check
      _
    $region31: #{tpu_custom_call.1} parent=1 // pred_check_branch
      %175 = sbr.rel (0) target = $region33
    $region32: #{tpu_custom_call.1} parent=1 // pred_region
      %177 = vsyncadd [#allocation3], 0
      %s179 = sshll.u32 [#allocation2], 4
      %s180 = int_to_ptr.vmem [resolvable:$true] %s179
      %s181 = sshll.u32 %s7, 4
      %s182 = int_to_ptr.hbm [resolvable:$true] %s181
      %184 = dma.vmem_to_hbm [thread:$0]  %s180, 32, %s182, [#allocation3]
    $region33: #{tpu_custom_call.1} parent=1 // pred_fallthru
      _
    // Predicated region
    $region34: #{tpu_custom_call.1} parent=1 // pred_check
      _
    $region35: #{tpu_custom_call.1} parent=1 // pred_check_branch
      %186 = sbr.rel (0) target = $region37
    $region36: #{tpu_custom_call.1} parent=1 // pred_region
      %188 = dma.done [#allocation3], 32
    $region37: #{tpu_custom_call.1} parent=1 // pred_fallthru
      _
    %189 = vsyncpa [#allocation3], 1

</llo_original>
